<compile_context>
chip_gen: v5e
topology: v5e:2x2
jax: 0.10.0
libtpu: 0.0.40
codegen_flags: <defaults>
</compile_context>

<pallas_src>
import functools

import jax
import jax.numpy as jnp
import numpy as np
from jax.experimental import pallas as pl
from jax.experimental.pallas import tpu as pltpu

_VMEM_LIMIT_BYTES = 32 * 1024 * 1024
_BN_EPS = 1e-5


def _round_up(x, m):
    return ((x + m - 1) // m) * m


# ----------------------------------------------------------------------------
# Kernel 1: tiled matmul (bf16 x bf16 -> f32 accumulate) + fused BN statistics
# ----------------------------------------------------------------------------
def _mm_stats_kernel(a_ref, b_ref, y_ref, st_ref, acc_ref):
    k = pl.program_id(2)

    @pl.when(k == 0)
    def _init():
        acc_ref[...] = jnp.zeros_like(acc_ref)

    acc_ref[...] += jnp.dot(a_ref[...], b_ref[...],
                            preferred_element_type=jnp.float32)

    @pl.when(k == pl.num_programs(2) - 1)
    def _finalize():
        acc = acc_ref[...]
        y_ref[...] = acc.astype(y_ref.dtype)
        # Per-(M-tile, N-tile) partial sums for BatchNorm batch statistics.
        st = jnp.concatenate(
            [jnp.sum(acc, axis=0, keepdims=True),
             jnp.sum(acc * acc, axis=0, keepdims=True)],
            axis=0,
        )
        st_ref[...] = st.reshape(st_ref.shape)


def matmul_stats(a, b, *, tm_cap=256, tn_cap=256, tk_cap=512,
                 out_dtype=jnp.bfloat16):
    """y = a @ b with lane-dense (padded) K and N.

    Returns (y[:M] with Np = round_up(N, 128..tn) columns,
             per-M-tile stats of shape (num_m_tiles, 2, Np)).
    Zero-padded rows/cols contribute exactly zero to y and to the stats.
    """
    M, K = a.shape
    K2, N = b.shape
    assert K == K2
    tm = min(tm_cap, _round_up(M, 8))
    tk = min(tk_cap, _round_up(K, 128))
    tn = min(tn_cap, _round_up(N, 128))
    Mp, Kp, Np = _round_up(M, tm), _round_up(K, tk), _round_up(N, tn)
    nm, nn, nk = Mp // tm, Np // tn, Kp // tk

    a_p = jnp.pad(a.astype(jnp.bfloat16), ((0, Mp - M), (0, Kp - K)))
    b_p = jnp.pad(b.astype(jnp.bfloat16), ((0, Kp - K), (0, Np - N)))

    y, stats = pl.pallas_call(
        _mm_stats_kernel,
        out_shape=(
            jax.ShapeDtypeStruct((Mp, Np), out_dtype),
            jax.ShapeDtypeStruct((nm, 2, Np), jnp.float32),
        ),
        grid_spec=pltpu.PrefetchScalarGridSpec(
            num_scalar_prefetch=0,
            grid=(nm, nn, nk),
            in_specs=[
                pl.BlockSpec((tm, tk), lambda i, j, k: (i, k)),
                pl.BlockSpec((tk, tn), lambda i, j, k: (k, j)),
            ],
            out_specs=[
                pl.BlockSpec((tm, tn), lambda i, j, k: (i, j)),
                pl.BlockSpec((1, 2, tn), lambda i, j, k: (i, 0, j)),
            ],
            scratch_shapes=[pltpu.VMEM((tm, tn), jnp.float32)],
        ),
        compiler_params=pltpu.CompilerParams(
            dimension_semantics=("parallel", "parallel", "arbitrary"),
            vmem_limit_bytes=_VMEM_LIMIT_BYTES,
        ),
    )(a_p, b_p)
    return y[:M], stats


def stats_to_scale_bias(stats, n_rows, gamma, beta, eps=_BN_EPS):
    """Finalize training-mode BN: fold batch mean / biased var into scale/bias.

    stats: (num_m_tiles, 2, Np) partial (sum, sum_sq) over rows.  Padded rows
    contributed zeros, so dividing by the true row count is exact.
    """
    tot = jnp.sum(stats, axis=0)                      # (2, Np)
    Np = tot.shape[1]
    C = gamma.shape[0]
    mean = tot[0] / n_rows
    var = jnp.maximum(tot[1] / n_rows - mean * mean, 0.0)
    scale_c = gamma.astype(jnp.float32) / jnp.sqrt(var[:C] + eps)
    bias_c = beta.astype(jnp.float32) - mean[:C] * scale_c
    scale = jnp.zeros((Np,), jnp.float32).at[:C].set(scale_c)
    bias = jnp.zeros((Np,), jnp.float32).at[:C].set(bias_c)
    return scale, bias


# ----------------------------------------------------------------------------
# Kernel 2: fused BN-affine (+ optional affined residual) + ReLU epilogues
# ----------------------------------------------------------------------------
def _affine_relu_kernel(y_ref, s_ref, b_ref, o_ref):
    y = y_ref[...].astype(jnp.float32)
    z = y * s_ref[...] + b_ref[...]
    o_ref[...] = jnp.maximum(z, 0.0).astype(o_ref.dtype)


def _dual_affine_add_relu_kernel(y_ref, s_ref, b_ref, r_ref, rs_ref, rb_ref,
                                 o_ref):
    y = y_ref[...].astype(jnp.float32)
    r = r_ref[...].astype(jnp.float32)
    z = y * s_ref[...] + b_ref[...] + r * rs_ref[...] + rb_ref[...]
    o_ref[...] = jnp.maximum(z, 0.0).astype(o_ref.dtype)


def _ew_compiler_params():
    return pltpu.CompilerParams(
        dimension_semantics=("parallel",),
        vmem_limit_bytes=_VMEM_LIMIT_BYTES,
    )


def bn_affine_relu(y, scale, bias, *, out_dtype, tm_cap=512):
    """relu(y * scale + bias), per-channel scale/bias, no residual stream."""
    M, Np = y.shape
    tm = min(tm_cap, _round_up(M, 8))
    Mp = _round_up(M, tm)
    y_p = jnp.pad(y, ((0, Mp - M), (0, 0)))
    out = pl.pallas_call(
        _affine_relu_kernel,
        out_shape=jax.ShapeDtypeStruct((Mp, Np), out_dtype),
        grid=(Mp // tm,),
        in_specs=[
            pl.BlockSpec((tm, Np), lambda i: (i, 0)),
            pl.BlockSpec((1, Np), lambda i: (0, 0)),
            pl.BlockSpec((1, Np), lambda i: (0, 0)),
        ],
        out_specs=pl.BlockSpec((tm, Np), lambda i: (i, 0)),
        compiler_params=_ew_compiler_params(),
    )(y_p, scale.reshape(1, Np), bias.reshape(1, Np))
    return out[:M]


def bn_affine_add_relu(y, scale, bias, res, res_scale, res_bias, *,
                       out_dtype, tm_cap=512):
    """relu((y*scale+bias) + (res*res_scale+res_bias)) — main + shortcut BN
    affines and the residual add fused into one pass over y."""
    M, Np = y.shape
    tm = min(tm_cap, _round_up(M, 8))
    Mp = _round_up(M, tm)
    y_p = jnp.pad(y, ((0, Mp - M), (0, 0)))
    r_p = jnp.pad(res.astype(jnp.bfloat16),
                  ((0, Mp - M), (0, Np - res.shape[1])))
    out = pl.pallas_call(
        _dual_affine_add_relu_kernel,
        out_shape=jax.ShapeDtypeStruct((Mp, Np), out_dtype),
        grid=(Mp // tm,),
        in_specs=[
            pl.BlockSpec((tm, Np), lambda i: (i, 0)),
            pl.BlockSpec((1, Np), lambda i: (0, 0)),
            pl.BlockSpec((1, Np), lambda i: (0, 0)),
            pl.BlockSpec((tm, Np), lambda i: (i, 0)),
            pl.BlockSpec((1, Np), lambda i: (0, 0)),
            pl.BlockSpec((1, Np), lambda i: (0, 0)),
        ],
        out_specs=pl.BlockSpec((tm, Np), lambda i: (i, 0)),
        compiler_params=_ew_compiler_params(),
    )(y_p, scale.reshape(1, Np), bias.reshape(1, Np),
      r_p, res_scale.reshape(1, Np), res_bias.reshape(1, Np))
    return out[:M]


# ----------------------------------------------------------------------------
# Host-side glue: im2col, weight reshaping, BasicBlock forward
# ----------------------------------------------------------------------------
def im2col(x_nhwc, kh, kw, stride, pad):
    N, H, W, C = x_nhwc.shape
    xp = jnp.pad(x_nhwc, ((0, 0), (pad, pad), (pad, pad), (0, 0)))
    Ho = (H + 2 * pad - kh) // stride + 1
    Wo = (W + 2 * pad - kw) // stride + 1
    cols = []
    for i in range(kh):
        for j in range(kw):
            cols.append(xp[:, i:i + stride * Ho:stride,
                           j:j + stride * Wo:stride, :])
    patches = jnp.stack(cols, axis=3)                 # (N, Ho, Wo, kh*kw, C)
    return patches.reshape(N * Ho * Wo, kh * kw * C), (N, Ho, Wo)


def conv_weight_to_matrix(w):
    # PyTorch OIHW -> (KH*KW*Cin, Cout), matching im2col (kh, kw, cin) order.
    cout, cin, kh, kw = w.shape
    return jnp.transpose(w, (2, 3, 1, 0)).reshape(kh * kw * cin, cout)


def basic_block_forward(x_nchw, params, stride):
    N, Cin, H, W = x_nchw.shape
    planes = params["conv1_w"].shape[0]
    x = jnp.transpose(x_nchw, (0, 2, 3, 1)).astype(jnp.bfloat16)   # NHWC bf16

    # conv1 (3x3, stride, pad 1) -> bn1 -> relu
    a1, (_, Ho, Wo) = im2col(x, 3, 3, stride, 1)
    M = N * Ho * Wo
    y1, st1 = matmul_stats(a1, conv_weight_to_matrix(params["conv1_w"]))
    s1, b1 = stats_to_scale_bias(st1, M, params["bn1_g"], params["bn1_b"])
    out1 = bn_affine_relu(y1, s1, b1, out_dtype=jnp.bfloat16)      # (M, Np)

    # conv2 (3x3, stride 1, pad 1) -> bn2 (affine deferred to final kernel)
    out1_nhwc = out1[:, :planes].reshape(N, Ho, Wo, planes)
    a2, _ = im2col(out1_nhwc, 3, 3, 1, 1)
    y2, st2 = matmul_stats(a2, conv_weight_to_matrix(params["conv2_w"]))
    s2, b2 = stats_to_scale_bias(st2, M, params["bn2_g"], params["bn2_b"])
    Np = y2.shape[1]

    # shortcut path
    if stride != 1 or Cin != planes:
        xs = x[:, ::stride, ::stride, :].reshape(M, Cin)
        ys, sts = matmul_stats(xs, conv_weight_to_matrix(params["sc_w"]))
        ss, bs = stats_to_scale_bias(sts, M, params["sc_g"], params["sc_b"])
        res = ys
    else:
        res = x.reshape(M, Cin)
        ss = jnp.zeros((Np,), jnp.float32).at[:planes].set(1.0)
        bs = jnp.zeros((Np,), jnp.float32)

    # out = relu(bn2(conv2(out1)) + shortcut)  — single fused pass
    out = bn_affine_add_relu(y2, s2, b2, res, ss, bs, out_dtype=jnp.float32)
    out_nhwc = out[:, :planes].reshape(N, Ho, Wo, planes)
    return jnp.transpose(out_nhwc, (0, 3, 1, 2))                   # NCHW f32


# ----------------------------------------------------------------------------
# Pure-JAX reference (for validation)
# ----------------------------------------------------------------------------
def ref_forward(x, params, stride):
    def conv(x, w, s, pad):
        return jax.lax.conv_general_dilated(
            x, w, (s, s), [(pad, pad), (pad, pad)],
            dimension_numbers=("NCHW", "OIHW", "NCHW"),
            precision=jax.lax.Precision.HIGHEST)

    def bn(y, g, b, eps=_BN_EPS):
        mean = jnp.mean(y, axis=(0, 2, 3), keepdims=True)
        var = jnp.mean((y - mean) ** 2, axis=(0, 2, 3), keepdims=True)
        return ((y - mean) / jnp.sqrt(var + eps) * g.reshape(1, -1, 1, 1)
                + b.reshape(1, -1, 1, 1))

    planes = params["conv1_w"].shape[0]
    out = jax.nn.relu(bn(conv(x, params["conv1_w"], stride, 1),
                         params["bn1_g"], params["bn1_b"]))
    out = bn(conv(out, params["conv2_w"], 1, 1),
             params["bn2_g"], params["bn2_b"])
    if stride != 1 or x.shape[1] != planes:
        sc = bn(conv(x, params["sc_w"], stride, 0),
                params["sc_g"], params["sc_b"])
    else:
        sc = x
    return jax.nn.relu(out + sc)


# ----------------------------------------------------------------------------
if __name__ == "__main__":
    in_planes, planes, stride = 4, 8, 2
    N, H, W = 2, 16, 16

    k = jax.random.split(jax.random.PRNGKey(0), 9)
    params = {
        "conv1_w": 0.1 * jax.random.normal(k[0], (planes, in_planes, 3, 3),
                                           jnp.float32),
        "bn1_g": 1.0 + 0.1 * jax.random.normal(k[1], (planes,), jnp.float32),
        "bn1_b": 0.1 * jax.random.normal(k[2], (planes,), jnp.float32),
        "conv2_w": 0.1 * jax.random.normal(k[3], (planes, planes, 3, 3),
                                           jnp.float32),
        "bn2_g": 1.0 + 0.1 * jax.random.normal(k[4], (planes,), jnp.float32),
        "bn2_b": 0.1 * jax.random.normal(k[5], (planes,), jnp.float32),
        "sc_w": 0.1 * jax.random.normal(k[6], (planes, in_planes, 1, 1),
                                        jnp.float32),
        "sc_g": jnp.ones((planes,), jnp.float32),
        "sc_b": jnp.zeros((planes,), jnp.float32),
    }
    x = jax.random.normal(k[8], (N, in_planes, H, W), jnp.float32)

    fwd = jax.jit(functools.partial(basic_block_forward, stride=stride))
    out = jax.block_until_ready(fwd(x, params))

    ref = jax.block_until_ready(ref_forward(x, params, stride))
    # bf16 MXU inputs / bf16 intermediate activations -> looser tolerance.
    np.testing.assert_allclose(np.asarray(out), np.asarray(ref),
                               rtol=5e-2, atol=5e-2)

    print("KERNEL_OK")
</pallas_src>

<mosaic_0001>
module attributes {stable_mosaic.version = 11 : i64} {
  func.func @_mm_stats_kernel(%arg0: i32, %arg1: i32, %arg2: i32, %arg3: memref<128x128xbf16, #tpu.memory_space<vmem>>, %arg4: memref<128x128xbf16, #tpu.memory_space<vmem>>, %arg5: memref<128x128xbf16, #tpu.memory_space<vmem>>, %arg6: memref<1x2x128xf32, #tpu.memory_space<vmem>>, %arg7: memref<128x128xf32, #tpu.memory_space<vmem>>) attributes {dimension_semantics = [#tpu.dimension_semantics<parallel>, #tpu.dimension_semantics<parallel>, #tpu.dimension_semantics<arbitrary>], iteration_bounds = array<i64: 1, 1, 1>, scalar_prefetch = 0 : i64, scratch_operands = 1 : i64, tpu.core_type = #tpu.core_type<tc>, window_params = [{transform_indices = @transform_0, window_bounds = array<i64: 128, 128>}, {transform_indices = @transform_1, window_bounds = array<i64: 128, 128>}, {transform_indices = @transform_2, window_bounds = array<i64: 128, 128>}, {transform_indices = @transform_3, window_bounds = array<i64: 1, 2, 128>}]} {
    %c0_i32 = arith.constant 0 : i32
    %0 = arith.cmpi eq, %arg2, %c0_i32 : i32
    %1 = arith.extui %0 : i1 to i32
    %c0_i32_0 = arith.constant 0 : i32
    %2 = arith.cmpi ne, %1, %c0_i32_0 : i32
    scf.if %2 {
      %cst_10 = arith.constant 0.000000e+00 : f32
      %12 = vector.broadcast %cst_10 : f32 to vector<128x128xf32>
      %c0_11 = arith.constant 0 : index
      %c0_12 = arith.constant 0 : index
      %13 = vector.load %arg7[%c0_11, %c0_12] : memref<128x128xf32, #tpu.memory_space<vmem>>, vector<128x128xf32>
      tpu.vector_store %arg7[%c0_11, %c0_12], %12 {strides = array<i32>} : memref<128x128xf32, #tpu.memory_space<vmem>>, vector<128x128xf32>,
    } else {
    }
    %c0 = arith.constant 0 : index
    %c0_1 = arith.constant 0 : index
    %3 = vector.load %arg7[%c0, %c0_1] : memref<128x128xf32, #tpu.memory_space<vmem>>, vector<128x128xf32>
    %c0_2 = arith.constant 0 : index
    %c0_3 = arith.constant 0 : index
    %4 = vector.load %arg3[%c0_2, %c0_3] : memref<128x128xbf16, #tpu.memory_space<vmem>>, vector<128x128xbf16>
    %c0_4 = arith.constant 0 : index
    %c0_5 = arith.constant 0 : index
    %5 = vector.load %arg4[%c0_4, %c0_5] : memref<128x128xbf16, #tpu.memory_space<vmem>>, vector<128x128xbf16>
    %cst = arith.constant dense<0.000000e+00> : vector<128x128xf32>
    %6 = tpu.matmul %4, %5, %cst {dimension_numbers = #tpu.dot_dimension_numbers<[1], [0], [0], [1], [0, 0, 1, 1], [], []>} : vector<128x128xbf16>, vector<128x128xbf16>, vector<128x128xf32> -> vector<128x128xf32>
    %7 = arith.addf %3, %6 : vector<128x128xf32>
    %c0_6 = arith.constant 0 : index
    %c0_7 = arith.constant 0 : index
    %8 = vector.load %arg7[%c0_6, %c0_7] : memref<128x128xf32, #tpu.memory_space<vmem>>, vector<128x128xf32>
    tpu.vector_store %arg7[%c0_6, %c0_7], %7 {strides = array<i32>} : memref<128x128xf32, #tpu.memory_space<vmem>>, vector<128x128xf32>,
    %c0_i32_8 = arith.constant 0 : i32
    %9 = arith.cmpi eq, %arg2, %c0_i32_8 : i32
    %10 = arith.extui %9 : i1 to i32
    %c0_i32_9 = arith.constant 0 : i32
    %11 = arith.cmpi ne, %10, %c0_i32_9 : i32
    scf.if %11 {
      %c0_10 = arith.constant 0 : index
      %c0_11 = arith.constant 0 : index
      %12 = vector.load %arg7[%c0_10, %c0_11] : memref<128x128xf32, #tpu.memory_space<vmem>>, vector<128x128xf32>
      %13 = arith.truncf %12 : vector<128x128xf32> to vector<128x128xbf16>
      %c0_12 = arith.constant 0 : index
      %c0_13 = arith.constant 0 : index
      %14 = vector.load %arg5[%c0_12, %c0_13] : memref<128x128xbf16, #tpu.memory_space<vmem>>, vector<128x128xbf16>
      tpu.vector_store %arg5[%c0_12, %c0_13], %13 {strides = array<i32>} : memref<128x128xbf16, #tpu.memory_space<vmem>>, vector<128x128xbf16>,
      %cst_14 = arith.constant dense<0.000000e+00> : vector<128xf32>
      %15 = vector.multi_reduction <add>, %12, %cst_14 [0] : vector<128x128xf32> to vector<128xf32>
      %16 = vector.shape_cast %15 : vector<128xf32> to vector<1x128xf32>
      %17 = arith.mulf %12, %12 : vector<128x128xf32>
      %cst_15 = arith.constant dense<0.000000e+00> : vector<128xf32>
      %18 = vector.multi_reduction <add>, %17, %cst_15 [0] : vector<128x128xf32> to vector<128xf32>
      %19 = vector.shape_cast %18 : vector<128xf32> to vector<1x128xf32>
      %20 = tpu.concatenate %16, %19 in 0 : vector<1x128xf32>, vector<1x128xf32> -> vector<2x128xf32>
      %21 = vector.shape_cast %20 : vector<2x128xf32> to vector<1x2x128xf32>
      %c0_16 = arith.constant 0 : index
      %c0_17 = arith.constant 0 : index
      %c0_18 = arith.constant 0 : index
      %22 = vector.load %arg6[%c0_16, %c0_17, %c0_18] : memref<1x2x128xf32, #tpu.memory_space<vmem>>, vector<1x2x128xf32>
      tpu.vector_store %arg6[%c0_16, %c0_17, %c0_18], %21 {strides = array<i32>} : memref<1x2x128xf32, #tpu.memory_space<vmem>>, vector<1x2x128xf32>,
    } else {
    }
    return
  }
  func.func @transform_0(%arg0: i32, %arg1: i32, %arg2: i32) -> (i32, i32) {
    %c0_i32 = arith.constant 0 : i32
    return %arg0, %arg2 : i32, i32
  }
  func.func @transform_1(%arg0: i32, %arg1: i32, %arg2: i32) -> (i32, i32) {
    %c0_i32 = arith.constant 0 : i32
    return %arg2, %arg1 : i32, i32
  }
  func.func @transform_2(%arg0: i32, %arg1: i32, %arg2: i32) -> (i32, i32) {
    %c0_i32 = arith.constant 0 : i32
    return %arg0, %arg1 : i32, i32
  }
  func.func @transform_3(%arg0: i32, %arg1: i32, %arg2: i32) -> (i32, i32, i32) {
    %c0_i32 = arith.constant 0 : i32
    %c0_i32_0 = arith.constant 0 : i32
    return %arg0, %c0_i32, %arg1 : i32, i32, i32
  }
}

module attributes {stable_mosaic.version = 11 : i64} {
  func.func @_affine_relu_kernel(%arg0: i32, %arg1: memref<128x128xbf16, #tpu.memory_space<vmem>>, %arg2: memref<1x128xf32, #tpu.memory_space<vmem>>, %arg3: memref<1x128xf32, #tpu.memory_space<vmem>>, %arg4: memref<128x128xbf16, #tpu.memory_space<vmem>>) attributes {dimension_semantics = [#tpu.dimension_semantics<parallel>], iteration_bounds = array<i64: 1>, scalar_prefetch = 0 : i64, scratch_operands = 0 : i64, tpu.core_type = #tpu.core_type<tc>, window_params = [{transform_indices = @transform_0, window_bounds = array<i64: 128, 128>}, {pipeline_mode = #tpu.pipeline_mode<synchronous>, transform_indices = @transform_1, window_bounds = array<i64: 1, 128>}, {pipeline_mode = #tpu.pipeline_mode<synchronous>, transform_indices = @transform_2, window_bounds = array<i64: 1, 128>}, {transform_indices = @transform_3, window_bounds = array<i64: 128, 128>}]} {
    %c0 = arith.constant 0 : index
    %c0_0 = arith.constant 0 : index
    %0 = vector.load %arg1[%c0, %c0_0] : memref<128x128xbf16, #tpu.memory_space<vmem>>, vector<128x128xbf16>
    %1 = arith.extf %0 : vector<128x128xbf16> to vector<128x128xf32>
    %c0_1 = arith.constant 0 : index
    %c0_2 = arith.constant 0 : index
    %2 = vector.load %arg2[%c0_1, %c0_2] : memref<1x128xf32, #tpu.memory_space<vmem>>, vector<1x128xf32>
    %3 = vector.broadcast %2 : vector<1x128xf32> to vector<128x128xf32>
    %4 = arith.mulf %1, %3 : vector<128x128xf32>
    %c0_3 = arith.constant 0 : index
    %c0_4 = arith.constant 0 : index
    %5 = vector.load %arg3[%c0_3, %c0_4] : memref<1x128xf32, #tpu.memory_space<vmem>>, vector<1x128xf32>
    %6 = vector.broadcast %5 : vector<1x128xf32> to vector<128x128xf32>
    %7 = arith.addf %4, %6 : vector<128x128xf32>
    %cst = arith.constant 0.000000e+00 : f32
    %8 = vector.broadcast %cst : f32 to vector<128x128xf32>
    %9 = arith.maximumf %7, %8 : vector<128x128xf32>
    %10 = arith.truncf %9 : vector<128x128xf32> to vector<128x128xbf16>
    %c0_5 = arith.constant 0 : index
    %c0_6 = arith.constant 0 : index
    %11 = vector.load %arg4[%c0_5, %c0_6] : memref<128x128xbf16, #tpu.memory_space<vmem>>, vector<128x128xbf16>
    tpu.vector_store %arg4[%c0_5, %c0_6], %10 {strides = array<i32>} : memref<128x128xbf16, #tpu.memory_space<vmem>>, vector<128x128xbf16>,
    return
  }
  func.func @transform_0(%arg0: i32) -> (i32, i32) {
    %c0_i32 = arith.constant 0 : i32
    %c0_i32_0 = arith.constant 0 : i32
    return %arg0, %c0_i32 : i32, i32
  }
  func.func @transform_1(%arg0: i32) -> (i32, i32) {
    %c0_i32 = arith.constant 0 : i32
    %c0_i32_0 = arith.constant 0 : i32
    %c0_i32_1 = arith.constant 0 : i32
    return %c0_i32, %c0_i32_0 : i32, i32
  }
  func.func @transform_2(%arg0: i32) -> (i32, i32) {
    %c0_i32 = arith.constant 0 : i32
    %c0_i32_0 = arith.constant 0 : i32
    %c0_i32_1 = arith.constant 0 : i32
    return %c0_i32, %c0_i32_0 : i32, i32
  }
  func.func @transform_3(%arg0: i32) -> (i32, i32) {
    %c0_i32 = arith.constant 0 : i32
    %c0_i32_0 = arith.constant 0 : i32
    return %arg0, %c0_i32 : i32, i32
  }
}

module attributes {stable_mosaic.version = 11 : i64} {
  func.func @_dual_affine_add_relu_kernel(%arg0: i32, %arg1: memref<128x128xbf16, #tpu.memory_space<vmem>>, %arg2: memref<1x128xf32, #tpu.memory_space<vmem>>, %arg3: memref<1x128xf32, #tpu.memory_space<vmem>>, %arg4: memref<128x128xbf16, #tpu.memory_space<vmem>>, %arg5: memref<1x128xf32, #tpu.memory_space<vmem>>, %arg6: memref<1x128xf32, #tpu.memory_space<vmem>>, %arg7: memref<128x128xf32, #tpu.memory_space<vmem>>) attributes {dimension_semantics = [#tpu.dimension_semantics<parallel>], iteration_bounds = array<i64: 1>, scalar_prefetch = 0 : i64, scratch_operands = 0 : i64, tpu.core_type = #tpu.core_type<tc>, window_params = [{transform_indices = @transform_0, window_bounds = array<i64: 128, 128>}, {pipeline_mode = #tpu.pipeline_mode<synchronous>, transform_indices = @transform_1, window_bounds = array<i64: 1, 128>}, {pipeline_mode = #tpu.pipeline_mode<synchronous>, transform_indices = @transform_2, window_bounds = array<i64: 1, 128>}, {transform_indices = @transform_3, window_bounds = array<i64: 128, 128>}, {pipeline_mode = #tpu.pipeline_mode<synchronous>, transform_indices = @transform_4, window_bounds = array<i64: 1, 128>}, {pipeline_mode = #tpu.pipeline_mode<synchronous>, transform_indices = @transform_5, window_bounds = array<i64: 1, 128>}, {transform_indices = @transform_6, window_bounds = array<i64: 128, 128>}]} {
    %c0 = arith.constant 0 : index
    %c0_0 = arith.constant 0 : index
    %0 = vector.load %arg1[%c0, %c0_0] : memref<128x128xbf16, #tpu.memory_space<vmem>>, vector<128x128xbf16>
    %1 = arith.extf %0 : vector<128x128xbf16> to vector<128x128xf32>
    %c0_1 = arith.constant 0 : index
    %c0_2 = arith.constant 0 : index
    %2 = vector.load %arg4[%c0_1, %c0_2] : memref<128x128xbf16, #tpu.memory_space<vmem>>, vector<128x128xbf16>
    %3 = arith.extf %2 : vector<128x128xbf16> to vector<128x128xf32>
    %c0_3 = arith.constant 0 : index
    %c0_4 = arith.constant 0 : index
    %4 = vector.load %arg2[%c0_3, %c0_4] : memref<1x128xf32, #tpu.memory_space<vmem>>, vector<1x128xf32>
    %5 = vector.broadcast %4 : vector<1x128xf32> to vector<128x128xf32>
    %6 = arith.mulf %1, %5 : vector<128x128xf32>
    %c0_5 = arith.constant 0 : index
    %c0_6 = arith.constant 0 : index
    %7 = vector.load %arg3[%c0_5, %c0_6] : memref<1x128xf32, #tpu.memory_space<vmem>>, vector<1x128xf32>
    %8 = vector.broadcast %7 : vector<1x128xf32> to vector<128x128xf32>
    %9 = arith.addf %6, %8 : vector<128x128xf32>
    %c0_7 = arith.constant 0 : index
    %c0_8 = arith.constant 0 : index
    %10 = vector.load %arg5[%c0_7, %c0_8] : memref<1x128xf32, #tpu.memory_space<vmem>>, vector<1x128xf32>
    %11 = vector.broadcast %10 : vector<1x128xf32> to vector<128x128xf32>
    %12 = arith.mulf %3, %11 : vector<128x128xf32>
    %13 = arith.addf %9, %12 : vector<128x128xf32>
    %c0_9 = arith.constant 0 : index
    %c0_10 = arith.constant 0 : index
    %14 = vector.load %arg6[%c0_9, %c0_10] : memref<1x128xf32, #tpu.memory_space<vmem>>, vector<1x128xf32>
    %15 = vector.broadcast %14 : vector<1x128xf32> to vector<128x128xf32>
    %16 = arith.addf %13, %15 : vector<128x128xf32>
    %cst = arith.constant 0.000000e+00 : f32
    %17 = vector.broadcast %cst : f32 to vector<128x128xf32>
    %18 = arith.maximumf %16, %17 : vector<128x128xf32>
    %c0_11 = arith.constant 0 : index
    %c0_12 = arith.constant 0 : index
    %19 = vector.load %arg7[%c0_11, %c0_12] : memref<128x128xf32, #tpu.memory_space<vmem>>, vector<128x128xf32>
    tpu.vector_store %arg7[%c0_11, %c0_12], %18 {strides = array<i32>} : memref<128x128xf32, #tpu.memory_space<vmem>>, vector<128x128xf32>,
    return
  }
  func.func @transform_0(%arg0: i32) -> (i32, i32) {
    %c0_i32 = arith.constant 0 : i32
    %c0_i32_0 = arith.constant 0 : i32
    return %arg0, %c0_i32 : i32, i32
  }
  func.func @transform_1(%arg0: i32) -> (i32, i32) {
    %c0_i32 = arith.constant 0 : i32
    %c0_i32_0 = arith.constant 0 : i32
    %c0_i32_1 = arith.constant 0 : i32
    return %c0_i32, %c0_i32_0 : i32, i32
  }
  func.func @transform_2(%arg0: i32) -> (i32, i32) {
    %c0_i32 = arith.constant 0 : i32
    %c0_i32_0 = arith.constant 0 : i32
    %c0_i32_1 = arith.constant 0 : i32
    return %c0_i32, %c0_i32_0 : i32, i32
  }
  func.func @transform_3(%arg0: i32) -> (i32, i32) {
    %c0_i32 = arith.constant 0 : i32
    %c0_i32_0 = arith.constant 0 : i32
    return %arg0, %c0_i32 : i32, i32
  }
  func.func @transform_4(%arg0: i32) -> (i32, i32) {
    %c0_i32 = arith.constant 0 : i32
    %c0_i32_0 = arith.constant 0 : i32
    %c0_i32_1 = arith.constant 0 : i32
    return %c0_i32, %c0_i32_0 : i32, i32
  }
  func.func @transform_5(%arg0: i32) -> (i32, i32) {
    %c0_i32 = arith.constant 0 : i32
    %c0_i32_0 = arith.constant 0 : i32
    %c0_i32_1 = arith.constant 0 : i32
    return %c0_i32, %c0_i32_0 : i32, i32
  }
  func.func @transform_6(%arg0: i32) -> (i32, i32) {
    %c0_i32 = arith.constant 0 : i32
    %c0_i32_0 = arith.constant 0 : i32
    return %arg0, %c0_i32 : i32, i32
  }
}

</mosaic_0001>

<llo_original>
// kernel: basic_block_forward.6
$region0: #{basic_block_forward.6}
  #allocation0 [shape = 'u32[]', space=smem, size = 0x4, offset = 0x4, fixed_abs, tag = 'smem constant byte address 0x4 - core index']
  #allocation1 [shape = 'u32[72,128]{1,0:T(1,128)}', space=vmem, size = 0x9000, scoped, tag = 'internal scratch']
  %s0 = inlined_call_operand.vmem [shape: bf16[128,128], index: 0, kind: input, shape index: {}]
  %s1 = inlined_call_operand.vmem [shape: f32[1,128], index: 1, kind: input, shape index: {}]
  %s2 = inlined_call_operand.vmem [shape: f32[1,128], index: 2, kind: input, shape index: {}]
  %s3 = inlined_call_operand.vmem [shape: bf16[128,128], index: 3, kind: output, shape index: {}]
  %s4 = sld [smem:[#allocation0]]
  $region22: #{basic_block_forward.6} parent=0
    _
  %s6 = ssub.s32 1, %s4
  %s7 = scalar_select 0, %s6, %s4
  // Predicated region
  $region2: #{basic_block_forward.6} parent=0 // pred_check
    _
  $region3: #{basic_block_forward.6} parent=0 // pred_check_branch
    %9 = sbr.rel (0) target = $region5
  $region4: #{basic_block_forward.6} parent=0 // pred_region
    _
  $region5: #{basic_block_forward.6} parent=0 // pred_fallthru
    _
  // Predicated region
  $region6: #{basic_block_forward.6} parent=0 // pred_check
    _
  $region7: #{basic_block_forward.6} parent=0 // pred_check_branch
    %11 = sbr.rel (0) target = $region9
  $region8: #{basic_block_forward.6} parent=0 // pred_region
    _
  $region9: #{basic_block_forward.6} parent=0 // pred_fallthru
    _
  // Predicated region
  $region10: #{basic_block_forward.6} parent=0 // pred_check
    _
  $region11: #{basic_block_forward.6} parent=0 // pred_check_branch
    %13 = sbr.rel (0) target = $region13
  $region12: #{basic_block_forward.6} parent=0 // pred_region
    _
  $region13: #{basic_block_forward.6} parent=0 // pred_fallthru
    _
  %v14 = vld [vmem:[%s0] sm:$0xf]
  %v15 = vld [vmem:[%s0 + $0x4] sm:$0xf]
  %v16 = vld [vmem:[%s0 + $0x8] sm:$0xf]
  %v17 = vld [vmem:[%s0 + $0xc] sm:$0xf]
  %v18 = vld [vmem:[%s0 + $0x10] sm:$0xf]
  %v19 = vld [vmem:[%s0 + $0x14] sm:$0xf]
  %v20 = vld [vmem:[%s0 + $0x18] sm:$0xf]
  %v21 = vld [vmem:[%s0 + $0x1c] sm:$0xf]
  %v22 = vld [vmem:[%s0 + $0x20] sm:$0xf]
  %v23 = vld [vmem:[%s0 + $0x24] sm:$0xf]
  %v24 = vld [vmem:[%s0 + $0x28] sm:$0xf]
  %v25 = vld [vmem:[%s0 + $0x2c] sm:$0xf]
  %v26 = vld [vmem:[%s0 + $0x30] sm:$0xf]
  %v27 = vld [vmem:[%s0 + $0x34] sm:$0xf]
  %v28 = vld [vmem:[%s0 + $0x38] sm:$0xf]
  %v29 = vld [vmem:[%s0 + $0x3c] sm:$0xf]
  %v30 = vunpack.c.l.bf16 %v14
  %v31 = vunpack.c.l.bf16 %v15
  %v32 = vunpack.c.l.bf16 %v16
  %v33 = vunpack.c.l.bf16 %v17
  %v34 = vunpack.c.l.bf16 %v18
  %v35 = vunpack.c.l.bf16 %v19
  %v36 = vunpack.c.l.bf16 %v20
  %v37 = vunpack.c.l.bf16 %v21
  %v38 = vunpack.c.l.bf16 %v22
  %v39 = vunpack.c.l.bf16 %v23
  %v40 = vunpack.c.l.bf16 %v24
  %v41 = vunpack.c.l.bf16 %v25
  %v42 = vunpack.c.l.bf16 %v26
  %v43 = vunpack.c.l.bf16 %v27
  %v44 = vunpack.c.l.bf16 %v28
  %v45 = vunpack.c.l.bf16 %v29
  %v46 = vld [vmem:[%s1] sm:$0x1]
  %v48 = vperm.slane %v46, 0
  %v50 = vmul.f32 %v30, %v48
  %v51 = vmul.f32 %v31, %v48
  %v52 = vmul.f32 %v32, %v48
  %v53 = vmul.f32 %v33, %v48
  %v54 = vmul.f32 %v34, %v48
  %v55 = vmul.f32 %v35, %v48
  %v56 = vmul.f32 %v36, %v48
  %v57 = vmul.f32 %v37, %v48
  %v58 = vmul.f32 %v38, %v48
  %v59 = vmul.f32 %v39, %v48
  %v60 = vmul.f32 %v40, %v48
  %v61 = vmul.f32 %v41, %v48
  %v62 = vmul.f32 %v42, %v48
  %v63 = vmul.f32 %v43, %v48
  %v64 = vmul.f32 %v44, %v48
  %v65 = vmul.f32 %v45, %v48
  %v66 = vld [vmem:[%s2] sm:$0x1]
  %v68 = vperm.slane %v66, 0
  %v70 = vadd.f32 %v50, %v68
  %v71 = vadd.f32 %v51, %v68
  %v72 = vadd.f32 %v52, %v68
  %v73 = vadd.f32 %v53, %v68
  %v74 = vadd.f32 %v54, %v68
  %v75 = vadd.f32 %v55, %v68
  %v76 = vadd.f32 %v56, %v68
  %v77 = vadd.f32 %v57, %v68
  %v78 = vadd.f32 %v58, %v68
  %v79 = vadd.f32 %v59, %v68
  %v80 = vadd.f32 %v60, %v68
  %v81 = vadd.f32 %v61, %v68
  %v82 = vadd.f32 %v62, %v68
  %v83 = vadd.f32 %v63, %v68
  %v84 = vadd.f32 %v64, %v68
  %v85 = vadd.f32 %v65, %v68
  %v86 = vmax.f32 %v70, 0.0
  %v87 = vmax.f32 %v71, 0.0
  %v88 = vmax.f32 %v72, 0.0
  %v89 = vmax.f32 %v73, 0.0
  %v90 = vmax.f32 %v74, 0.0
  %v91 = vmax.f32 %v75, 0.0
  %v92 = vmax.f32 %v76, 0.0
  %v93 = vmax.f32 %v77, 0.0
  %v94 = vmax.f32 %v78, 0.0
  %v95 = vmax.f32 %v79, 0.0
  %v96 = vmax.f32 %v80, 0.0
  %v97 = vmax.f32 %v81, 0.0
  %v98 = vmax.f32 %v82, 0.0
  %v99 = vmax.f32 %v83, 0.0
  %v100 = vmax.f32 %v84, 0.0
  %v101 = vmax.f32 %v85, 0.0
  %v102 = vpack.c.bf16 %v86, %v86
  %v103 = vpack.c.bf16 %v87, %v87
  %v104 = vpack.c.bf16 %v88, %v88
  %v105 = vpack.c.bf16 %v89, %v89
  %v106 = vpack.c.bf16 %v90, %v90
  %v107 = vpack.c.bf16 %v91, %v91
  %v108 = vpack.c.bf16 %v92, %v92
  %v109 = vpack.c.bf16 %v93, %v93
  %v110 = vpack.c.bf16 %v94, %v94
  %v111 = vpack.c.bf16 %v95, %v95
  %v112 = vpack.c.bf16 %v96, %v96
  %v113 = vpack.c.bf16 %v97, %v97
  %v114 = vpack.c.bf16 %v98, %v98
  %v115 = vpack.c.bf16 %v99, %v99
  %v116 = vpack.c.bf16 %v100, %v100
  %v117 = vpack.c.bf16 %v101, %v101
  %118 = vst [vmem:[%s3] sm:$0xf] %v102
  %119 = vst [vmem:[%s3 + $0x4] sm:$0xf] %v103
  %120 = vst [vmem:[%s3 + $0x8] sm:$0xf] %v104
  %121 = vst [vmem:[%s3 + $0xc] sm:$0xf] %v105
  %122 = vst [vmem:[%s3 + $0x10] sm:$0xf] %v106
  %123 = vst [vmem:[%s3 + $0x14] sm:$0xf] %v107
  %124 = vst [vmem:[%s3 + $0x18] sm:$0xf] %v108
  %125 = vst [vmem:[%s3 + $0x1c] sm:$0xf] %v109
  %126 = vst [vmem:[%s3 + $0x20] sm:$0xf] %v110
  %127 = vst [vmem:[%s3 + $0x24] sm:$0xf] %v111
  %128 = vst [vmem:[%s3 + $0x28] sm:$0xf] %v112
  %129 = vst [vmem:[%s3 + $0x2c] sm:$0xf] %v113
  %130 = vst [vmem:[%s3 + $0x30] sm:$0xf] %v114
  %131 = vst [vmem:[%s3 + $0x34] sm:$0xf] %v115
  %132 = vst [vmem:[%s3 + $0x38] sm:$0xf] %v116
  %133 = vst [vmem:[%s3 + $0x3c] sm:$0xf] %v117
  // Predicated region
  $region14: #{basic_block_forward.6} parent=0 // pred_check
    _
  $region15: #{basic_block_forward.6} parent=0 // pred_check_branch
    %135 = sbr.rel (0) target = $region17
  $region16: #{basic_block_forward.6} parent=0 // pred_region
    _
  $region17: #{basic_block_forward.6} parent=0 // pred_fallthru
    _
  // Predicated region
  $region18: #{basic_block_forward.6} parent=0 // pred_check
    _
  $region19: #{basic_block_forward.6} parent=0 // pred_check_branch
    %137 = sbr.rel (0) target = $region21
  $region20: #{basic_block_forward.6} parent=0 // pred_region
    _
  $region21: #{basic_block_forward.6} parent=0 // pred_fallthru
    _

// kernel: basic_block_forward.5
$region0: #{basic_block_forward.5}
  #allocation0 [shape = 'u32[]', space=smem, size = 0x4, offset = 0x4, fixed_abs, tag = 'smem constant byte address 0x4 - core index']
  #allocation1 [shape = 'u32[72,128]{1,0:T(1,128)}', space=vmem, size = 0x9000, scoped, tag = 'internal scratch']
  #allocation2 [shape = 'f32[128,128]{1,0:T(8,128)}', space=vmem, size = 0x10000, scoped, tag = 'scratch operand']
  %s0 = inlined_call_operand.vmem [shape: bf16[128,128], index: 0, kind: input, shape index: {}]
  %s1 = inlined_call_operand.vmem [shape: bf16[128,128], index: 1, kind: input, shape index: {}]
  %s2 = inlined_call_operand.vmem [shape: bf16[128,128], index: 2, kind: output, shape index: {0}]
  %s3 = inlined_call_operand.vmem [shape: f32[1,2,128], index: 3, kind: output, shape index: {1}]
  %4 = xla_tuple %s2, %s3
  %s5 = sld [smem:[#allocation0]]
  $region34: #{basic_block_forward.5} parent=0
    _
  %s7 = ssub.s32 1, %s5
  %s8 = scalar_select 0, %s7, %s5
  // Predicated region
  $region2: #{basic_block_forward.5} parent=0 // pred_check
    _
  $region3: #{basic_block_forward.5} parent=0 // pred_check_branch
    %10 = sbr.rel (0) target = $region5
  $region4: #{basic_block_forward.5} parent=0 // pred_region
    _
  $region5: #{basic_block_forward.5} parent=0 // pred_fallthru
    _
  // Predicated region
  $region6: #{basic_block_forward.5} parent=0 // pred_check
    _
  $region7: #{basic_block_forward.5} parent=0 // pred_check_branch
    %12 = sbr.rel (0) target = $region9
  $region8: #{basic_block_forward.5} parent=0 // pred_region
    _
  $region9: #{basic_block_forward.5} parent=0 // pred_fallthru
    _
  %p13 = scmp.eq.s32.totalorder 0, 0
  // Predicated region
  $region10: #{basic_block_forward.5} parent=0 // pred_check
    %p14 = pneg %p13
  $region11: #{basic_block_forward.5} parent=0 // pred_check_branch
    %16 = sbr.rel (%p14) target = $region13
  $region12: #{basic_block_forward.5} parent=0 // pred_region
    %17 = vst [vmem:[#allocation2] sm:$0xff] 0.0
    %18 = vst [vmem:[#allocation2 + $0x8] sm:$0xff] 0.0
    %19 = vst [vmem:[#allocation2 + $0x10] sm:$0xff] 0.0
    %20 = vst [vmem:[#allocation2 + $0x18] sm:$0xff] 0.0
    %21 = vst [vmem:[#allocation2 + $0x20] sm:$0xff] 0.0
    %22 = vst [vmem:[#allocation2 + $0x28] sm:$0xff] 0.0
    %23 = vst [vmem:[#allocation2 + $0x30] sm:$0xff] 0.0
    %24 = vst [vmem:[#allocation2 + $0x38] sm:$0xff] 0.0
    %25 = vst [vmem:[#allocation2 + $0x40] sm:$0xff] 0.0
    %26 = vst [vmem:[#allocation2 + $0x48] sm:$0xff] 0.0
    %27 = vst [vmem:[#allocation2 + $0x50] sm:$0xff] 0.0
    %28 = vst [vmem:[#allocation2 + $0x58] sm:$0xff] 0.0
    %29 = vst [vmem:[#allocation2 + $0x60] sm:$0xff] 0.0
    %30 = vst [vmem:[#allocation2 + $0x68] sm:$0xff] 0.0
    %31 = vst [vmem:[#allocation2 + $0x70] sm:$0xff] 0.0
    %32 = vst [vmem:[#allocation2 + $0x78] sm:$0xff] 0.0
  $region13: #{basic_block_forward.5} parent=0 // pred_fallthru
    _
  %v33 = vld [vmem:[#allocation2] sm:$0xff]
  %v34 = vld [vmem:[#allocation2 + $0x8] sm:$0xff]
  %v35 = vld [vmem:[#allocation2 + $0x10] sm:$0xff]
  %v36 = vld [vmem:[#allocation2 + $0x18] sm:$0xff]
  %v37 = vld [vmem:[#allocation2 + $0x20] sm:$0xff]
  %v38 = vld [vmem:[#allocation2 + $0x28] sm:$0xff]
  %v39 = vld [vmem:[#allocation2 + $0x30] sm:$0xff]
  %v40 = vld [vmem:[#allocation2 + $0x38] sm:$0xff]
  %v41 = vld [vmem:[#allocation2 + $0x40] sm:$0xff]
  %v42 = vld [vmem:[#allocation2 + $0x48] sm:$0xff]
  %v43 = vld [vmem:[#allocation2 + $0x50] sm:$0xff]
  %v44 = vld [vmem:[#allocation2 + $0x58] sm:$0xff]
  %v45 = vld [vmem:[#allocation2 + $0x60] sm:$0xff]
  %v46 = vld [vmem:[#allocation2 + $0x68] sm:$0xff]
  %v47 = vld [vmem:[#allocation2 + $0x70] sm:$0xff]
  %v48 = vld [vmem:[#allocation2 + $0x78] sm:$0xff]
  %v49 = vld [vmem:[%s0] sm:$0xf]
  %v50 = vld [vmem:[%s0 + $0x4] sm:$0xf]
  %v51 = vld [vmem:[%s0 + $0x8] sm:$0xf]
  %v52 = vld [vmem:[%s0 + $0xc] sm:$0xf]
  %v53 = vld [vmem:[%s0 + $0x10] sm:$0xf]
  %v54 = vld [vmem:[%s0 + $0x14] sm:$0xf]
  %v55 = vld [vmem:[%s0 + $0x18] sm:$0xf]
  %v56 = vld [vmem:[%s0 + $0x1c] sm:$0xf]
  %v57 = vld [vmem:[%s0 + $0x20] sm:$0xf]
  %v58 = vld [vmem:[%s0 + $0x24] sm:$0xf]
  %v59 = vld [vmem:[%s0 + $0x28] sm:$0xf]
  %v60 = vld [vmem:[%s0 + $0x2c] sm:$0xf]
  %v61 = vld [vmem:[%s0 + $0x30] sm:$0xf]
  %v62 = vld [vmem:[%s0 + $0x34] sm:$0xf]
  %v63 = vld [vmem:[%s0 + $0x38] sm:$0xf]
  %v64 = vld [vmem:[%s0 + $0x3c] sm:$0xf]
  %v65 = vld [vmem:[%s1] sm:$0xf]
  %v66 = vld [vmem:[%s1 + $0x4] sm:$0xf]
  %v67 = vld [vmem:[%s1 + $0x8] sm:$0xf]
  %v68 = vld [vmem:[%s1 + $0xc] sm:$0xf]
  %v69 = vld [vmem:[%s1 + $0x10] sm:$0xf]
  %v70 = vld [vmem:[%s1 + $0x14] sm:$0xf]
  %v71 = vld [vmem:[%s1 + $0x18] sm:$0xf]
  %v72 = vld [vmem:[%s1 + $0x1c] sm:$0xf]
  %v73 = vld [vmem:[%s1 + $0x20] sm:$0xf]
  %v74 = vld [vmem:[%s1 + $0x24] sm:$0xf]
  %v75 = vld [vmem:[%s1 + $0x28] sm:$0xf]
  %v76 = vld [vmem:[%s1 + $0x2c] sm:$0xf]
  %v77 = vld [vmem:[%s1 + $0x30] sm:$0xf]
  %v78 = vld [vmem:[%s1 + $0x34] sm:$0xf]
  %v79 = vld [vmem:[%s1 + $0x38] sm:$0xf]
  %v80 = vld [vmem:[%s1 + $0x3c] sm:$0xf]
  %v97 = vunpack.c.l.b16 %v49
  %v98 = vunpack.c.l.b16 %v50
  %v99 = vunpack.c.l.b16 %v51
  %v100 = vunpack.c.l.b16 %v52
  %v101 = vunpack.c.l.b16 %v53
  %v102 = vunpack.c.l.b16 %v54
  %v103 = vunpack.c.l.b16 %v55
  %v104 = vunpack.c.l.b16 %v56
  %v105 = vunpack.c.l.b16 %v57
  %v106 = vunpack.c.l.b16 %v58
  %v107 = vunpack.c.l.b16 %v59
  %v108 = vunpack.c.l.b16 %v60
  %v109 = vunpack.c.l.b16 %v61
  %v110 = vunpack.c.l.b16 %v62
  %v111 = vunpack.c.l.b16 %v63
  %v112 = vunpack.c.l.b16 %v64
  %v113 = vpack.c.b16 %v98, %v97
  %v114 = vpack.c.b16 %v100, %v99
  %v115 = vpack.c.b16 %v102, %v101
  %v116 = vpack.c.b16 %v104, %v103
  %v117 = vpack.c.b16 %v106, %v105
  %v118 = vpack.c.b16 %v108, %v107
  %v119 = vpack.c.b16 %v110, %v109
  %v120 = vpack.c.b16 %v112, %v111
  %v145 = vunpack.c.l.b16 %v65
  %v146 = vunpack.c.l.b16 %v66
  %v147 = vunpack.c.l.b16 %v67
  %v148 = vunpack.c.l.b16 %v68
  %v149 = vunpack.c.l.b16 %v69
  %v150 = vunpack.c.l.b16 %v70
  %v151 = vunpack.c.l.b16 %v71
  %v152 = vunpack.c.l.b16 %v72
  %v153 = vunpack.c.l.b16 %v73
  %v154 = vunpack.c.l.b16 %v74
  %v155 = vunpack.c.l.b16 %v75
  %v156 = vunpack.c.l.b16 %v76
  %v157 = vunpack.c.l.b16 %v77
  %v158 = vunpack.c.l.b16 %v78
  %v159 = vunpack.c.l.b16 %v79
  %v160 = vunpack.c.l.b16 %v80
  %v161 = vpack.c.b16 %v146, %v145
  %v162 = vpack.c.b16 %v148, %v147
  %v163 = vpack.c.b16 %v150, %v149
  %v164 = vpack.c.b16 %v152, %v151
  %v165 = vpack.c.b16 %v154, %v153
  %v166 = vpack.c.b16 %v156, %v155
  %v167 = vpack.c.b16 %v158, %v157
  %v168 = vpack.c.b16 %v160, %v159
  %177 = vmatpush.bf16.msra.mxu0 %v168
  %178 = vmatpush.bf16.msra.mxu0 %v167
  %179 = vmatpush.bf16.msra.mxu0 %v166
  %180 = vmatpush.bf16.msra.mxu0 %v165
  %181 = vmatpush.bf16.msra.mxu0 %v164
  %182 = vmatpush.bf16.msra.mxu0 %v163
  %183 = vmatpush.bf16.msra.mxu0 %v162
  %184 = vmatpush.bf16.msra.mxu0 %v161
  %185 = vmatmul.bf16.gmra.mxu0 %v113
  %v186 = vpop.f32.mrf.mxu0
  %v187 = vadd.f32 0.0, %v186
  %v188 = vpop.f32.mrf.mxu0
  %v189 = vadd.f32 0.0, %v188
  %190 = vmatmul.bf16.gmra.mxu0 %v114
  %v191 = vpop.f32.mrf.mxu0
  %v192 = vadd.f32 0.0, %v191
  %v193 = vpop.f32.mrf.mxu0
  %v194 = vadd.f32 0.0, %v193
  %195 = vmatmul.bf16.gmra.mxu0 %v115
  %v196 = vpop.f32.mrf.mxu0
  %v197 = vadd.f32 0.0, %v196
  %v198 = vpop.f32.mrf.mxu0
  %v199 = vadd.f32 0.0, %v198
  %200 = vmatmul.bf16.gmra.mxu0 %v116
  %v201 = vpop.f32.mrf.mxu0
  %v202 = vadd.f32 0.0, %v201
  %v203 = vpop.f32.mrf.mxu0
  %v204 = vadd.f32 0.0, %v203
  %205 = vmatmul.bf16.gmra.mxu0 %v117
  %v206 = vpop.f32.mrf.mxu0
  %v207 = vadd.f32 0.0, %v206
  %v208 = vpop.f32.mrf.mxu0
  %v209 = vadd.f32 0.0, %v208
  %210 = vmatmul.bf16.gmra.mxu0 %v118
  %v211 = vpop.f32.mrf.mxu0
  %v212 = vadd.f32 0.0, %v211
  %v213 = vpop.f32.mrf.mxu0
  %v214 = vadd.f32 0.0, %v213
  %215 = vmatmul.bf16.gmra.mxu0 %v119
  %v216 = vpop.f32.mrf.mxu0
  %v217 = vadd.f32 0.0, %v216
  %v218 = vpop.f32.mrf.mxu0
  %v219 = vadd.f32 0.0, %v218
  %220 = vmatmul.bf16.gmra.mxu0 %v120
  %v221 = vpop.f32.mrf.mxu0
  %v222 = vadd.f32 0.0, %v221
  %v223 = vpop.f32.mrf.mxu0
  %v224 = vadd.f32 0.0, %v223
  %225 = vdwg.mxu0
  %v226 = vadd.f32 %v33, %v187
  %v227 = vadd.f32 %v34, %v189
  %v228 = vadd.f32 %v35, %v192
  %v229 = vadd.f32 %v36, %v194
  %v230 = vadd.f32 %v37, %v197
  %v231 = vadd.f32 %v38, %v199
  %v232 = vadd.f32 %v39, %v202
  %v233 = vadd.f32 %v40, %v204
  %v234 = vadd.f32 %v41, %v207
  %v235 = vadd.f32 %v42, %v209
  %v236 = vadd.f32 %v43, %v212
  %v237 = vadd.f32 %v44, %v214
  %v238 = vadd.f32 %v45, %v217
  %v239 = vadd.f32 %v46, %v219
  %v240 = vadd.f32 %v47, %v222
  %v241 = vadd.f32 %v48, %v224
  %242 = vst [vmem:[#allocation2] sm:$0xff] %v226
  %243 = vst [vmem:[#allocation2 + $0x8] sm:$0xff] %v227
  %244 = vst [vmem:[#allocation2 + $0x10] sm:$0xff] %v228
  %245 = vst [vmem:[#allocation2 + $0x18] sm:$0xff] %v229
  %246 = vst [vmem:[#allocation2 + $0x20] sm:$0xff] %v230
  %247 = vst [vmem:[#allocation2 + $0x28] sm:$0xff] %v231
  %248 = vst [vmem:[#allocation2 + $0x30] sm:$0xff] %v232
  %249 = vst [vmem:[#allocation2 + $0x38] sm:$0xff] %v233
  %250 = vst [vmem:[#allocation2 + $0x40] sm:$0xff] %v234
  %251 = vst [vmem:[#allocation2 + $0x48] sm:$0xff] %v235
  %252 = vst [vmem:[#allocation2 + $0x50] sm:$0xff] %v236
  %253 = vst [vmem:[#allocation2 + $0x58] sm:$0xff] %v237
  %254 = vst [vmem:[#allocation2 + $0x60] sm:$0xff] %v238
  %255 = vst [vmem:[#allocation2 + $0x68] sm:$0xff] %v239
  %256 = vst [vmem:[#allocation2 + $0x70] sm:$0xff] %v240
  %257 = vst [vmem:[#allocation2 + $0x78] sm:$0xff] %v241
  // Predicated region
  $region14: #{basic_block_forward.5} parent=0 // pred_check
    %p258 = pneg %p13
  $region15: #{basic_block_forward.5} parent=0 // pred_check_branch
    %260 = sbr.rel (%p258) target = $region17
  $region16: #{basic_block_forward.5} parent=0 // pred_region
    %v261 = vld [vmem:[#allocation2] sm:$0xff]
    %v262 = vld [vmem:[#allocation2 + $0x8] sm:$0xff]
    %v263 = vld [vmem:[#allocation2 + $0x10] sm:$0xff]
    %v264 = vld [vmem:[#allocation2 + $0x18] sm:$0xff]
    %v265 = vld [vmem:[#allocation2 + $0x20] sm:$0xff]
    %v266 = vld [vmem:[#allocation2 + $0x28] sm:$0xff]
    %v267 = vld [vmem:[#allocation2 + $0x30] sm:$0xff]
    %v268 = vld [vmem:[#allocation2 + $0x38] sm:$0xff]
    %v269 = vld [vmem:[#allocation2 + $0x40] sm:$0xff]
    %v270 = vld [vmem:[#allocation2 + $0x48] sm:$0xff]
    %v271 = vld [vmem:[#allocation2 + $0x50] sm:$0xff]
    %v272 = vld [vmem:[#allocation2 + $0x58] sm:$0xff]
    %v273 = vld [vmem:[#allocation2 + $0x60] sm:$0xff]
    %v274 = vld [vmem:[#allocation2 + $0x68] sm:$0xff]
    %v275 = vld [vmem:[#allocation2 + $0x70] sm:$0xff]
    %v276 = vld [vmem:[#allocation2 + $0x78] sm:$0xff]
    %v277 = vpack.c.bf16 %v261, %v261
    %v278 = vpack.c.bf16 %v262, %v262
    %v279 = vpack.c.bf16 %v263, %v263
    %v280 = vpack.c.bf16 %v264, %v264
    %v281 = vpack.c.bf16 %v265, %v265
    %v282 = vpack.c.bf16 %v266, %v266
    %v283 = vpack.c.bf16 %v267, %v267
    %v284 = vpack.c.bf16 %v268, %v268
    %v285 = vpack.c.bf16 %v269, %v269
    %v286 = vpack.c.bf16 %v270, %v270
    %v287 = vpack.c.bf16 %v271, %v271
    %v288 = vpack.c.bf16 %v272, %v272
    %v289 = vpack.c.bf16 %v273, %v273
    %v290 = vpack.c.bf16 %v274, %v274
    %v291 = vpack.c.bf16 %v275, %v275
    %v292 = vpack.c.bf16 %v276, %v276
    %293 = vst [vmem:[%s2] sm:$0xf] %v277
    %294 = vst [vmem:[%s2 + $0x4] sm:$0xf] %v278
    %295 = vst [vmem:[%s2 + $0x8] sm:$0xf] %v279
    %296 = vst [vmem:[%s2 + $0xc] sm:$0xf] %v280
    %297 = vst [vmem:[%s2 + $0x10] sm:$0xf] %v281
    %298 = vst [vmem:[%s2 + $0x14] sm:$0xf] %v282
    %299 = vst [vmem:[%s2 + $0x18] sm:$0xf] %v283
    %300 = vst [vmem:[%s2 + $0x1c] sm:$0xf] %v284
    %301 = vst [vmem:[%s2 + $0x20] sm:$0xf] %v285
    %302 = vst [vmem:[%s2 + $0x24] sm:$0xf] %v286
    %303 = vst [vmem:[%s2 + $0x28] sm:$0xf] %v287
    %304 = vst [vmem:[%s2 + $0x2c] sm:$0xf] %v288
    %305 = vst [vmem:[%s2 + $0x30] sm:$0xf] %v289
    %306 = vst [vmem:[%s2 + $0x34] sm:$0xf] %v290
    %307 = vst [vmem:[%s2 + $0x38] sm:$0xf] %v291
    %308 = vst [vmem:[%s2 + $0x3c] sm:$0xf] %v292
    %v309 = vadd.f32 %v261, %v262
    %v310 = vadd.f32 %v309, %v263
    %v311 = vadd.f32 %v310, %v264
    %v312 = vadd.f32 %v311, %v265
    %v313 = vadd.f32 %v312, %v266
    %v314 = vadd.f32 %v313, %v267
    %v315 = vadd.f32 %v314, %v268
    %v316 = vadd.f32 %v315, %v269
    %v317 = vadd.f32 %v316, %v270
    %v318 = vadd.f32 %v317, %v271
    %v319 = vadd.f32 %v318, %v272
    %v320 = vadd.f32 %v319, %v273
    %v321 = vadd.f32 %v320, %v274
    %v322 = vadd.f32 %v321, %v275
    %v323 = vadd.f32 %v322, %v276
    %v324 = vrot.slane %v323, 4
    %v325 = vadd.f32 %v323, %v324
    %v326 = vrot.slane %v325, 2
    %v327 = vadd.f32 %v325, %v326
    %v328 = vrot.slane %v327, 1
    %v329 = vadd.f32 %v327, %v328
    %v330 = vmul.f32 %v261, %v261
    %v331 = vmul.f32 %v262, %v262
    %v332 = vmul.f32 %v263, %v263
    %v333 = vmul.f32 %v264, %v264
    %v334 = vmul.f32 %v265, %v265
    %v335 = vmul.f32 %v266, %v266
    %v336 = vmul.f32 %v267, %v267
    %v337 = vmul.f32 %v268, %v268
    %v338 = vmul.f32 %v269, %v269
    %v339 = vmul.f32 %v270, %v270
    %v340 = vmul.f32 %v271, %v271
    %v341 = vmul.f32 %v272, %v272
    %v342 = vmul.f32 %v273, %v273
    %v343 = vmul.f32 %v274, %v274
    %v344 = vmul.f32 %v275, %v275
    %v345 = vmul.f32 %v276, %v276
    %v346 = vadd.f32 %v330, %v331
    %v347 = vadd.f32 %v346, %v332
    %v348 = vadd.f32 %v347, %v333
    %v349 = vadd.f32 %v348, %v334
    %v350 = vadd.f32 %v349, %v335
    %v351 = vadd.f32 %v350, %v336
    %v352 = vadd.f32 %v351, %v337
    %v353 = vadd.f32 %v352, %v338
    %v354 = vadd.f32 %v353, %v339
    %v355 = vadd.f32 %v354, %v340
    %v356 = vadd.f32 %v355, %v341
    %v357 = vadd.f32 %v356, %v342
    %v358 = vadd.f32 %v357, %v343
    %v359 = vadd.f32 %v358, %v344
    %v360 = vadd.f32 %v359, %v345
    %v361 = vrot.slane %v360, 4
    %v362 = vadd.f32 %v360, %v361
    %v363 = vrot.slane %v362, 2
    %v364 = vadd.f32 %v362, %v363
    %v365 = vrot.slane %v364, 1
    %v366 = vadd.f32 %v364, %v365
    %vm367 = vcmask 1040384
    %v368 = vsel %vm367, %v329, %v366
    %369 = vst [vmem:[%s3] sm:$0x3] %v368
  $region17: #{basic_block_forward.5} parent=0 // pred_fallthru
    _
  // Predicated region
  $region18: #{basic_block_forward.5} parent=0 // pred_check
    _
  $region19: #{basic_block_forward.5} parent=0 // pred_check_branch
    %371 = sbr.rel (0) target = $region21
  $region20: #{basic_block_forward.5} parent=0 // pred_region
    _
  $region21: #{basic_block_forward.5} parent=0 // pred_fallthru
    _
  // Predicated region
  $region22: #{basic_block_forward.5} parent=0 // pred_check
    _
  $region23: #{basic_block_forward.5} parent=0 // pred_check_branch
    %373 = sbr.rel (0) target = $region25
  $region24: #{basic_block_forward.5} parent=0 // pred_region
    _
  $region25: #{basic_block_forward.5} parent=0 // pred_fallthru
    _
  // Predicated region
  $region26: #{basic_block_forward.5} parent=0 // pred_check
    _
  $region27: #{basic_block_forward.5} parent=0 // pred_check_branch
    %375 = sbr.rel (0) target = $region29
  $region28: #{basic_block_forward.5} parent=0 // pred_region
    _
  $region29: #{basic_block_forward.5} parent=0 // pred_fallthru
    _
  // Predicated region
  $region30: #{basic_block_forward.5} parent=0 // pred_check
    _
  $region31: #{basic_block_forward.5} parent=0 // pred_check_branch
    %377 = sbr.rel (0) target = $region33
  $region32: #{basic_block_forward.5} parent=0 // pred_region
    _
  $region33: #{basic_block_forward.5} parent=0 // pred_fallthru
    _

// kernel: basic_block_forward.9
$region0: #{basic_block_forward.9}
  #allocation0 [shape = 'u32[]', space=smem, size = 0x4, offset = 0x4, fixed_abs, tag = 'smem constant byte address 0x4 - core index']
  #allocation1 [shape = 'u32[72,128]{1,0:T(1,128)}', space=vmem, size = 0x9000, scoped, tag = 'internal scratch']
  %s0 = inlined_call_operand.vmem [shape: bf16[128,128], index: 0, kind: input, shape index: {}]
  %s1 = inlined_call_operand.vmem [shape: f32[1,128], index: 1, kind: input, shape index: {}]
  %s2 = inlined_call_operand.vmem [shape: f32[1,128], index: 2, kind: input, shape index: {}]
  %s3 = inlined_call_operand.vmem [shape: bf16[128,128], index: 3, kind: input, shape index: {}]
  %s4 = inlined_call_operand.vmem [shape: f32[1,128], index: 4, kind: input, shape index: {}]
  %s5 = inlined_call_operand.vmem [shape: f32[1,128], index: 5, kind: input, shape index: {}]
  %s6 = inlined_call_operand.vmem [shape: f32[128,128], index: 6, kind: output, shape index: {}]
  %s7 = sld [smem:[#allocation0]]
  $region34: #{basic_block_forward.9} parent=0
    _
  %s9 = ssub.s32 1, %s7
  %s10 = scalar_select 0, %s9, %s7
  // Predicated region
  $region2: #{basic_block_forward.9} parent=0 // pred_check
    _
  $region3: #{basic_block_forward.9} parent=0 // pred_check_branch
    %12 = sbr.rel (0) target = $region5
  $region4: #{basic_block_forward.9} parent=0 // pred_region
    _
  $region5: #{basic_block_forward.9} parent=0 // pred_fallthru
    _
  // Predicated region
  $region6: #{basic_block_forward.9} parent=0 // pred_check
    _
  $region7: #{basic_block_forward.9} parent=0 // pred_check_branch
    %14 = sbr.rel (0) target = $region9
  $region8: #{basic_block_forward.9} parent=0 // pred_region
    _
  $region9: #{basic_block_forward.9} parent=0 // pred_fallthru
    _
  // Predicated region
  $region10: #{basic_block_forward.9} parent=0 // pred_check
    _
  $region11: #{basic_block_forward.9} parent=0 // pred_check_branch
    %16 = sbr.rel (0) target = $region13
  $region12: #{basic_block_forward.9} parent=0 // pred_region
    _
  $region13: #{basic_block_forward.9} parent=0 // pred_fallthru
    _
  // Predicated region
  $region14: #{basic_block_forward.9} parent=0 // pred_check
    _
  $region15: #{basic_block_forward.9} parent=0 // pred_check_branch
    %18 = sbr.rel (0) target = $region17
  $region16: #{basic_block_forward.9} parent=0 // pred_region
    _
  $region17: #{basic_block_forward.9} parent=0 // pred_fallthru
    _
  // Predicated region
  $region18: #{basic_block_forward.9} parent=0 // pred_check
    _
  $region19: #{basic_block_forward.9} parent=0 // pred_check_branch
    %20 = sbr.rel (0) target = $region21
  $region20: #{basic_block_forward.9} parent=0 // pred_region
    _
  $region21: #{basic_block_forward.9} parent=0 // pred_fallthru
    _
  // Predicated region
  $region22: #{basic_block_forward.9} parent=0 // pred_check
    _
  $region23: #{basic_block_forward.9} parent=0 // pred_check_branch
    %22 = sbr.rel (0) target = $region25
  $region24: #{basic_block_forward.9} parent=0 // pred_region
    _
  $region25: #{basic_block_forward.9} parent=0 // pred_fallthru
    _
  %v23 = vld [vmem:[%s0] sm:$0xf]
  %v24 = vld [vmem:[%s0 + $0x4] sm:$0xf]
  %v25 = vld [vmem:[%s0 + $0x8] sm:$0xf]
  %v26 = vld [vmem:[%s0 + $0xc] sm:$0xf]
  %v27 = vld [vmem:[%s0 + $0x10] sm:$0xf]
  %v28 = vld [vmem:[%s0 + $0x14] sm:$0xf]
  %v29 = vld [vmem:[%s0 + $0x18] sm:$0xf]
  %v30 = vld [vmem:[%s0 + $0x1c] sm:$0xf]
  %v31 = vld [vmem:[%s0 + $0x20] sm:$0xf]
  %v32 = vld [vmem:[%s0 + $0x24] sm:$0xf]
  %v33 = vld [vmem:[%s0 + $0x28] sm:$0xf]
  %v34 = vld [vmem:[%s0 + $0x2c] sm:$0xf]
  %v35 = vld [vmem:[%s0 + $0x30] sm:$0xf]
  %v36 = vld [vmem:[%s0 + $0x34] sm:$0xf]
  %v37 = vld [vmem:[%s0 + $0x38] sm:$0xf]
  %v38 = vld [vmem:[%s0 + $0x3c] sm:$0xf]
  %v39 = vunpack.c.l.bf16 %v23
  %v40 = vunpack.c.l.bf16 %v24
  %v41 = vunpack.c.l.bf16 %v25
  %v42 = vunpack.c.l.bf16 %v26
  %v43 = vunpack.c.l.bf16 %v27
  %v44 = vunpack.c.l.bf16 %v28
  %v45 = vunpack.c.l.bf16 %v29
  %v46 = vunpack.c.l.bf16 %v30
  %v47 = vunpack.c.l.bf16 %v31
  %v48 = vunpack.c.l.bf16 %v32
  %v49 = vunpack.c.l.bf16 %v33
  %v50 = vunpack.c.l.bf16 %v34
  %v51 = vunpack.c.l.bf16 %v35
  %v52 = vunpack.c.l.bf16 %v36
  %v53 = vunpack.c.l.bf16 %v37
  %v54 = vunpack.c.l.bf16 %v38
  %v55 = vld [vmem:[%s3] sm:$0xf]
  %v56 = vld [vmem:[%s3 + $0x4] sm:$0xf]
  %v57 = vld [vmem:[%s3 + $0x8] sm:$0xf]
  %v58 = vld [vmem:[%s3 + $0xc] sm:$0xf]
  %v59 = vld [vmem:[%s3 + $0x10] sm:$0xf]
  %v60 = vld [vmem:[%s3 + $0x14] sm:$0xf]
  %v61 = vld [vmem:[%s3 + $0x18] sm:$0xf]
  %v62 = vld [vmem:[%s3 + $0x1c] sm:$0xf]
  %v63 = vld [vmem:[%s3 + $0x20] sm:$0xf]
  %v64 = vld [vmem:[%s3 + $0x24] sm:$0xf]
  %v65 = vld [vmem:[%s3 + $0x28] sm:$0xf]
  %v66 = vld [vmem:[%s3 + $0x2c] sm:$0xf]
  %v67 = vld [vmem:[%s3 + $0x30] sm:$0xf]
  %v68 = vld [vmem:[%s3 + $0x34] sm:$0xf]
  %v69 = vld [vmem:[%s3 + $0x38] sm:$0xf]
  %v70 = vld [vmem:[%s3 + $0x3c] sm:$0xf]
  %v71 = vunpack.c.l.bf16 %v55
  %v72 = vunpack.c.l.bf16 %v56
  %v73 = vunpack.c.l.bf16 %v57
  %v74 = vunpack.c.l.bf16 %v58
  %v75 = vunpack.c.l.bf16 %v59
  %v76 = vunpack.c.l.bf16 %v60
  %v77 = vunpack.c.l.bf16 %v61
  %v78 = vunpack.c.l.bf16 %v62
  %v79 = vunpack.c.l.bf16 %v63
  %v80 = vunpack.c.l.bf16 %v64
  %v81 = vunpack.c.l.bf16 %v65
  %v82 = vunpack.c.l.bf16 %v66
  %v83 = vunpack.c.l.bf16 %v67
  %v84 = vunpack.c.l.bf16 %v68
  %v85 = vunpack.c.l.bf16 %v69
  %v86 = vunpack.c.l.bf16 %v70
  %v87 = vld [vmem:[%s1] sm:$0x1]
  %v89 = vperm.slane %v87, 0
  %v91 = vmul.f32 %v39, %v89
  %v92 = vmul.f32 %v40, %v89
  %v93 = vmul.f32 %v41, %v89
  %v94 = vmul.f32 %v42, %v89
  %v95 = vmul.f32 %v43, %v89
  %v96 = vmul.f32 %v44, %v89
  %v97 = vmul.f32 %v45, %v89
  %v98 = vmul.f32 %v46, %v89
  %v99 = vmul.f32 %v47, %v89
  %v100 = vmul.f32 %v48, %v89
  %v101 = vmul.f32 %v49, %v89
  %v102 = vmul.f32 %v50, %v89
  %v103 = vmul.f32 %v51, %v89
  %v104 = vmul.f32 %v52, %v89
  %v105 = vmul.f32 %v53, %v89
  %v106 = vmul.f32 %v54, %v89
  %v107 = vld [vmem:[%s2] sm:$0x1]
  %v109 = vperm.slane %v107, 0
  %v111 = vadd.f32 %v91, %v109
  %v112 = vadd.f32 %v92, %v109
  %v113 = vadd.f32 %v93, %v109
  %v114 = vadd.f32 %v94, %v109
  %v115 = vadd.f32 %v95, %v109
  %v116 = vadd.f32 %v96, %v109
  %v117 = vadd.f32 %v97, %v109
  %v118 = vadd.f32 %v98, %v109
  %v119 = vadd.f32 %v99, %v109
  %v120 = vadd.f32 %v100, %v109
  %v121 = vadd.f32 %v101, %v109
  %v122 = vadd.f32 %v102, %v109
  %v123 = vadd.f32 %v103, %v109
  %v124 = vadd.f32 %v104, %v109
  %v125 = vadd.f32 %v105, %v109
  %v126 = vadd.f32 %v106, %v109
  %v127 = vld [vmem:[%s4] sm:$0x1]
  %v129 = vperm.slane %v127, 0
  %v131 = vmul.f32 %v71, %v129
  %v132 = vmul.f32 %v72, %v129
  %v133 = vmul.f32 %v73, %v129
  %v134 = vmul.f32 %v74, %v129
  %v135 = vmul.f32 %v75, %v129
  %v136 = vmul.f32 %v76, %v129
  %v137 = vmul.f32 %v77, %v129
  %v138 = vmul.f32 %v78, %v129
  %v139 = vmul.f32 %v79, %v129
  %v140 = vmul.f32 %v80, %v129
  %v141 = vmul.f32 %v81, %v129
  %v142 = vmul.f32 %v82, %v129
  %v143 = vmul.f32 %v83, %v129
  %v144 = vmul.f32 %v84, %v129
  %v145 = vmul.f32 %v85, %v129
  %v146 = vmul.f32 %v86, %v129
  %v147 = vadd.f32 %v111, %v131
  %v148 = vadd.f32 %v112, %v132
  %v149 = vadd.f32 %v113, %v133
  %v150 = vadd.f32 %v114, %v134
  %v151 = vadd.f32 %v115, %v135
  %v152 = vadd.f32 %v116, %v136
  %v153 = vadd.f32 %v117, %v137
  %v154 = vadd.f32 %v118, %v138
  %v155 = vadd.f32 %v119, %v139
  %v156 = vadd.f32 %v120, %v140
  %v157 = vadd.f32 %v121, %v141
  %v158 = vadd.f32 %v122, %v142
  %v159 = vadd.f32 %v123, %v143
  %v160 = vadd.f32 %v124, %v144
  %v161 = vadd.f32 %v125, %v145
  %v162 = vadd.f32 %v126, %v146
  %v163 = vld [vmem:[%s5] sm:$0x1]
  %v165 = vperm.slane %v163, 0
  %v167 = vadd.f32 %v147, %v165
  %v168 = vadd.f32 %v148, %v165
  %v169 = vadd.f32 %v149, %v165
  %v170 = vadd.f32 %v150, %v165
  %v171 = vadd.f32 %v151, %v165
  %v172 = vadd.f32 %v152, %v165
  %v173 = vadd.f32 %v153, %v165
  %v174 = vadd.f32 %v154, %v165
  %v175 = vadd.f32 %v155, %v165
  %v176 = vadd.f32 %v156, %v165
  %v177 = vadd.f32 %v157, %v165
  %v178 = vadd.f32 %v158, %v165
  %v179 = vadd.f32 %v159, %v165
  %v180 = vadd.f32 %v160, %v165
  %v181 = vadd.f32 %v161, %v165
  %v182 = vadd.f32 %v162, %v165
  %v183 = vmax.f32 %v167, 0.0
  %v184 = vmax.f32 %v168, 0.0
  %v185 = vmax.f32 %v169, 0.0
  %v186 = vmax.f32 %v170, 0.0
  %v187 = vmax.f32 %v171, 0.0
  %v188 = vmax.f32 %v172, 0.0
  %v189 = vmax.f32 %v173, 0.0
  %v190 = vmax.f32 %v174, 0.0
  %v191 = vmax.f32 %v175, 0.0
  %v192 = vmax.f32 %v176, 0.0
  %v193 = vmax.f32 %v177, 0.0
  %v194 = vmax.f32 %v178, 0.0
  %v195 = vmax.f32 %v179, 0.0
  %v196 = vmax.f32 %v180, 0.0
  %v197 = vmax.f32 %v181, 0.0
  %v198 = vmax.f32 %v182, 0.0
  %199 = vst [vmem:[%s6] sm:$0xff] %v183
  %200 = vst [vmem:[%s6 + $0x8] sm:$0xff] %v184
  %201 = vst [vmem:[%s6 + $0x10] sm:$0xff] %v185
  %202 = vst [vmem:[%s6 + $0x18] sm:$0xff] %v186
  %203 = vst [vmem:[%s6 + $0x20] sm:$0xff] %v187
  %204 = vst [vmem:[%s6 + $0x28] sm:$0xff] %v188
  %205 = vst [vmem:[%s6 + $0x30] sm:$0xff] %v189
  %206 = vst [vmem:[%s6 + $0x38] sm:$0xff] %v190
  %207 = vst [vmem:[%s6 + $0x40] sm:$0xff] %v191
  %208 = vst [vmem:[%s6 + $0x48] sm:$0xff] %v192
  %209 = vst [vmem:[%s6 + $0x50] sm:$0xff] %v193
  %210 = vst [vmem:[%s6 + $0x58] sm:$0xff] %v194
  %211 = vst [vmem:[%s6 + $0x60] sm:$0xff] %v195
  %212 = vst [vmem:[%s6 + $0x68] sm:$0xff] %v196
  %213 = vst [vmem:[%s6 + $0x70] sm:$0xff] %v197
  %214 = vst [vmem:[%s6 + $0x78] sm:$0xff] %v198
  // Predicated region
  $region26: #{basic_block_forward.9} parent=0 // pred_check
    _
  $region27: #{basic_block_forward.9} parent=0 // pred_check_branch
    %216 = sbr.rel (0) target = $region29
  $region28: #{basic_block_forward.9} parent=0 // pred_region
    _
  $region29: #{basic_block_forward.9} parent=0 // pred_fallthru
    _
  // Predicated region
  $region30: #{basic_block_forward.9} parent=0 // pred_check
    _
  $region31: #{basic_block_forward.9} parent=0 // pred_check_branch
    %218 = sbr.rel (0) target = $region33
  $region32: #{basic_block_forward.9} parent=0 // pred_region
    _
  $region33: #{basic_block_forward.9} parent=0 // pred_fallthru
    _

</llo_original>
